<compile_context>
chip_gen: v5e
topology: v5e:2x2
jax: 0.10.0
libtpu: 0.0.40
codegen_flags: <defaults>
</compile_context>

<pallas_src>
import numpy as np
import jax
import jax.numpy as jnp
from jax import lax
from jax.experimental import pallas as pl
from jax.experimental.pallas import tpu as pltpu


def _round_up(x, m):
    return (x + m - 1) // m * m


def _conv_kernel(x_ref, w_ref, b_ref, o_ref):
    # x_ref: (Kc, l_tile)     bf16 stacked shifted input windows (contraction axis)
    # w_ref: (co_tile, Kc)    bf16 packed, pre-masked weights
    # b_ref: (co_tile, 1)     f32 bias
    # o_ref: (co_tile, l_tile)
    acc = jnp.dot(w_ref[...], x_ref[...], preferred_element_type=jnp.float32)
    o_ref[...] = (acc + b_ref[...]).astype(o_ref.dtype)


def masked_convolution(x, weight, bias, mask, compute_dtype=jnp.bfloat16):
    """Equivalent of MaskedConvolution.forward (stride=1, dilation=1).

    x: (N, C_in, H, W); weight: (C_out, C_in, Kh, Kw); bias: (C_out,); mask: (Kh, Kw).
    Returns (N, C_out, H_out, W_out)  (== (N, C_out, H, W) for odd kernel sizes).
    """
    N, C_in, H, W = x.shape
    C_out = weight.shape[0]
    K_h, K_w = mask.shape
    pad_h = (K_h - 1) // 2
    pad_w = (K_w - 1) // 2
    H_pad, W_pad = H + 2 * pad_h, W + 2 * pad_w
    H_out, W_out = H_pad - K_h + 1, W_pad - K_w + 1

    # --- static tap selection (mask is a fixed buffer in the module) ---
    if isinstance(mask, jax.core.Tracer):
        # TODO(synk): traced mask -> cannot prune zero taps statically; keep all K*K
        # taps (weights are still pre-masked, so this is correct, just more work).
        taps = [(kh, kw) for kh in range(K_h) for kw in range(K_w)]
    else:
        mask_host = np.asarray(jax.device_get(mask))
        taps = [(kh, kw) for kh in range(K_h) for kw in range(K_w)
                if float(mask_host[kh, kw]) != 0.0]
    if not taps:
        taps = [(0, 0)]  # all-zero mask -> zero weights -> output is just bias
    T = len(taps)

    # --- hardware-friendly sizing ---
    itemsize = jnp.dtype(compute_dtype).itemsize
    c_align = 16 if itemsize == 2 else 8          # bf16 sublane packing
    C_in_p = _round_up(C_in, c_align)
    Kc = T * C_in_p                               # fused contraction dim

    C_out_p8 = _round_up(C_out, 8)
    # 128 fills v5e's MXU output dim; 2 pushes per 256-wide MXU on v6e/v7x.
    co_tile = C_out_p8 if C_out_p8 <= 256 else 128
    C_out_p = _round_up(C_out_p8, co_tile)

    P = N * H_pad * W_pad                         # batch-folded padded spatial extent
    L_out = _round_up(P, 128)                     # lane-dense output width
    l_tile = min(2048, L_out)
    if L_out // l_tile < 2 and L_out > 128:       # >= 2 lane steps: feed both v7x TCs
        l_tile = _round_up(L_out // 2, 128)
    L_out_p = _round_up(L_out, l_tile)
    d_max = (K_h - 1) * W_pad + (K_w - 1)         # largest tap lane offset

    # --- pre-mask weights once and pack taps along the contraction axis ---
    wm = (weight * mask[None, None].astype(weight.dtype)).astype(jnp.float32)
    w_taps = jnp.stack([wm[:, :, kh, kw] for (kh, kw) in taps], axis=1)   # (C_out, T, C_in)
    w_taps = jnp.pad(w_taps, ((0, C_out_p - C_out), (0, 0), (0, C_in_p - C_in)))
    w_packed = w_taps.reshape(C_out_p, Kc).astype(compute_dtype)
    b_col = jnp.pad(bias.astype(jnp.float32).reshape(C_out, 1),
                    ((0, C_out_p - C_out), (0, 0)))

    # --- glue: pad + batch-fold + flatten, then stack the T shifted windows ONCE.
    # Tap (kh, kw) == lane offset kh*W_pad + kw in this layout, so the kernel does
    # no per-tap slicing; garbage lanes (padded rows/cols, cross-image) are sliced
    # off after the kernel and never contaminate kept lanes.
    x_pad = jnp.pad(x, ((0, 0), (0, 0), (pad_h, pad_h), (pad_w, pad_w)))
    x_flat = jnp.transpose(x_pad, (1, 0, 2, 3)).reshape(C_in, P).astype(compute_dtype)
    x_flat = jnp.pad(x_flat, ((0, C_in_p - C_in), (0, L_out_p + d_max - P)))
    tap_offsets = [kh * W_pad + kw for (kh, kw) in taps]
    x_stacked = jnp.concatenate(
        [x_flat[:, d:d + L_out_p] for d in tap_offsets], axis=0)          # (Kc, L_out_p)

    n_co = C_out_p // co_tile
    n_l = L_out_p // l_tile
    out_dtype = x.dtype
    out_bsz = jnp.dtype(out_dtype).itemsize
    block_bytes = 2 * (Kc * l_tile * itemsize          # x lane-tile (double-buffered)
                       + co_tile * Kc * itemsize       # weight tile
                       + co_tile * 4                   # bias column
                       + co_tile * l_tile * out_bsz)   # output tile
    vmem_limit = min(max(2 * block_bytes, 8 << 20), 64 << 20)

    out_wide = pl.pallas_call(
        _conv_kernel,
        out_shape=jax.ShapeDtypeStruct((C_out_p, L_out_p), out_dtype),
        grid=(n_co, n_l),
        in_specs=[
            pl.BlockSpec((Kc, l_tile), lambda j, l: (0, l)),     # streamed lane tiles
            pl.BlockSpec((co_tile, Kc), lambda j, l: (j, 0)),    # resident per C_out row
            pl.BlockSpec((co_tile, 1), lambda j, l: (j, 0)),
        ],
        out_specs=pl.BlockSpec((co_tile, l_tile), lambda j, l: (j, l)),
        compiler_params=pltpu.CompilerParams(
            dimension_semantics=("parallel", "parallel"),
            vmem_limit_bytes=vmem_limit),
    )(x_stacked, w_packed, b_col)

    # --- glue: un-fold batch, drop padded channels / garbage lanes ---
    out = out_wide[:C_out, :P].reshape(C_out, N, H_pad, W_pad)
    out = jnp.transpose(out, (1, 0, 2, 3))[:, :, :H_out, :W_out]
    return out


if __name__ == "__main__":
    key = jax.random.PRNGKey(0)
    N, C_in, C_out, H, W, K = 2, 4, 8, 16, 16, 3

    kx, kw_, kb = jax.random.split(key, 3)
    x = jax.random.normal(kx, (N, C_in, H, W), jnp.float32)
    weight = jax.random.normal(kw_, (C_out, C_in, K, K), jnp.float32) * 0.1
    bias = jax.random.normal(kb, (C_out,), jnp.float32) * 0.1

    # PixelCNN type-'A'-style mask: rows above center + left-of-center in center row.
    mask = jnp.zeros((K, K), jnp.float32)
    mask = mask.at[:K // 2, :].set(1.0)
    mask = mask.at[K // 2, :K // 2].set(1.0)

    out = masked_convolution(x, weight, bias, mask)
    jax.block_until_ready(out)

    p = (K - 1) // 2
    # Reference with the same bf16 operand rounding (f32 accumulation) -> tight check.
    x_bf = x.astype(jnp.bfloat16).astype(jnp.float32)
    w_bf = (weight * mask[None, None]).astype(jnp.bfloat16).astype(jnp.float32)
    ref_bf = lax.conv_general_dilated(
        x_bf, w_bf, window_strides=(1, 1), padding=((p, p), (p, p)),
        dimension_numbers=("NCHW", "OIHW", "NCHW")) + bias[None, :, None, None]
    assert out.shape == ref_bf.shape, (out.shape, ref_bf.shape)
    assert jnp.allclose(out, ref_bf, atol=2e-3, rtol=2e-3), \
        float(jnp.max(jnp.abs(out - ref_bf)))

    # Sanity check against the pure-f32 module semantics (looser: bf16 rounding of operands).
    ref_f32 = lax.conv_general_dilated(
        x, weight * mask[None, None], window_strides=(1, 1), padding=((p, p), (p, p)),
        dimension_numbers=("NCHW", "OIHW", "NCHW")) + bias[None, :, None, None]
    assert jnp.allclose(out, ref_f32, atol=5e-2, rtol=5e-2), \
        float(jnp.max(jnp.abs(out - ref_f32)))

    print("KERNEL_OK")
</pallas_src>

<mosaic_0001>
module attributes {stable_mosaic.version = 11 : i64} {
  func.func @_conv_kernel(%arg0: i32, %arg1: i32, %arg2: memref<64x384xbf16, #tpu.memory_space<vmem>>, %arg3: memref<8x64xbf16, #tpu.memory_space<vmem>>, %arg4: memref<8x1xf32, #tpu.memory_space<vmem>>, %arg5: memref<8x384xf32, #tpu.memory_space<vmem>>) attributes {dimension_semantics = [#tpu.dimension_semantics<parallel>, #tpu.dimension_semantics<parallel>], iteration_bounds = array<i64: 1, 2>, scalar_prefetch = 0 : i64, scratch_operands = 0 : i64, tpu.core_type = #tpu.core_type<tc>, window_params = [{transform_indices = @transform_0, window_bounds = array<i64: 64, 384>}, {transform_indices = @transform_1, window_bounds = array<i64: 8, 64>}, {transform_indices = @transform_2, window_bounds = array<i64: 8, 1>}, {transform_indices = @transform_3, window_bounds = array<i64: 8, 384>}]} {
    %c0 = arith.constant 0 : index
    %c0_0 = arith.constant 0 : index
    %0 = vector.load %arg3[%c0, %c0_0] : memref<8x64xbf16, #tpu.memory_space<vmem>>, vector<8x64xbf16>
    %c0_1 = arith.constant 0 : index
    %c0_2 = arith.constant 0 : index
    %1 = vector.load %arg2[%c0_1, %c0_2] : memref<64x384xbf16, #tpu.memory_space<vmem>>, vector<64x384xbf16>
    %cst = arith.constant dense<0.000000e+00> : vector<8x384xf32>
    %2 = tpu.matmul %0, %1, %cst {dimension_numbers = #tpu.dot_dimension_numbers<[1], [0], [0], [1], [0, 0, 1, 1], [], []>} : vector<8x64xbf16>, vector<64x384xbf16>, vector<8x384xf32> -> vector<8x384xf32>
    %c0_3 = arith.constant 0 : index
    %c0_4 = arith.constant 0 : index
    %3 = vector.load %arg4[%c0_3, %c0_4] : memref<8x1xf32, #tpu.memory_space<vmem>>, vector<8x1xf32>
    %4 = vector.broadcast %3 : vector<8x1xf32> to vector<8x384xf32>
    %5 = arith.addf %2, %4 : vector<8x384xf32>
    %c0_5 = arith.constant 0 : index
    %c0_6 = arith.constant 0 : index
    %6 = vector.load %arg5[%c0_5, %c0_6] : memref<8x384xf32, #tpu.memory_space<vmem>>, vector<8x384xf32>
    tpu.vector_store %arg5[%c0_5, %c0_6], %5 {strides = array<i32>} : memref<8x384xf32, #tpu.memory_space<vmem>>, vector<8x384xf32>,
    return
  }
  func.func @transform_0(%arg0: i32, %arg1: i32) -> (i32, i32) {
    %c0_i32 = arith.constant 0 : i32
    %c0_i32_0 = arith.constant 0 : i32
    return %c0_i32, %arg1 : i32, i32
  }
  func.func @transform_1(%arg0: i32, %arg1: i32) -> (i32, i32) {
    %c0_i32 = arith.constant 0 : i32
    %c0_i32_0 = arith.constant 0 : i32
    return %arg0, %c0_i32 : i32, i32
  }
  func.func @transform_2(%arg0: i32, %arg1: i32) -> (i32, i32) {
    %c0_i32 = arith.constant 0 : i32
    %c0_i32_0 = arith.constant 0 : i32
    return %arg0, %c0_i32 : i32, i32
  }
  func.func @transform_3(%arg0: i32, %arg1: i32) -> (i32, i32) {
    %c0_i32 = arith.constant 0 : i32
    return %arg0, %arg1 : i32, i32
  }
}

</mosaic_0001>

<llo_original>
// kernel: tpu_custom_call.1
$region0: #{tpu_custom_call.1}
  #allocation0 [shape = 'u32[]', space=smem, size = 0x4, offset = 0x4, fixed_abs, tag = 'smem constant byte address 0x4 - core index']
  #allocation1 [shape = 'u32[72,128]{1,0:T(1,128)}', space=vmem, size = 0x9000, scoped, tag = 'internal scratch']
  %s0 = inlined_call_operand.hbm [shape: bf16[64,768], index: 0, kind: input, shape index: {}]
  %s1 = inlined_call_operand.vmem [shape: bf16[8,64], index: 1, kind: input, shape index: {}]
  %s2 = inlined_call_operand.vmem [shape: f32[8,1], index: 2, kind: input, shape index: {}]
  %s3 = inlined_call_operand.hbm [shape: f32[8,768], index: 3, kind: output, shape index: {}]
  %s4 = sld [smem:[#allocation0]]
  $region49: #{tpu_custom_call.1} parent=0
    _
  %s6 = ssub.s32 1, %s4
  %s7 = scalar_select 0, %s6, %s4
  $region1: #{tpu_custom_call.1} parent=0
    #allocation2 [shape = 'u8[98304]{0}', space=vmem, size = 0x18000, scoped, tag = 'input window, operand 0']
    #allocation3 [shape = 's32[2]{0}', space=sflag, size = 0x8, scoped, tag = 'scoped memory for tpu_custom_call.1']
    #allocation4 [shape = 's32[2]{0}', space=sflag, size = 0x8, scoped, tag = 'scoped memory for tpu_custom_call.1']
    #allocation5 [shape = 'u8[24576]{0}', space=vmem, size = 0x6000, scoped, tag = 'output window, operand 0']
    %8 = vsyncpa [#allocation3], 0
    %s9 = scalar_lea.sflag [#allocation3], 1
    %10 = vsyncpa %s9, 0
    %11 = vsyncpa [#allocation4], 0
    %s12 = scalar_lea.sflag [#allocation4], 1
    %13 = vsyncpa %s12, 0
    loop: start=0, step=1, limit=4
    $region2: #{tpu_custom_call.1} parent=1 // loop_pre_header
      _
    $region3: #{tpu_custom_call.1} parent=1 // loop_header
      %s15 = sphi 0, %s19
      %p16 = scmp.ge.s32.totalorder %s15, 4
      %s22 = sphi 0, %s34
      %s23 = sphi 0, %s30
      %s24 = sphi 0, %s22
      %s25 = sphi 0, %s23
      %s26 = sphi 0, %s24
      %s27 = sphi 0, %s25
      %s37 = sphi 0, %s39
      %s40 = sphi 0, %s37
      %s41 = sphi 0, %s40
      %s57 = sphi 0, %s41
      %s63 = sphi 0, %s65
      %s66 = sphi 0, %s63
      %s67 = sphi 0, %s66
      %s83 = sphi 0, %s67
      %s89 = sphi 0, %s91
      %s92 = sphi 0, %s89
      %s93 = sphi 0, %s92
      %s109 = sphi 0, %s93
      %s117 = sphi 0, %s119
      %s120 = sphi 0, %s117
      %s121 = sphi 0, %s120
      %s137 = sphi 0, %s121
    $region4: #{tpu_custom_call.1} parent=1 // loop_header_branch
      %18 = sbr.rel (%p16) target = $region8
    $region5: #{tpu_custom_call.1} parent=1 // loop_body
      %s20 = ssub.s32 %s15, 1
      %s21 = ssub.s32 %s15, 2
      %s28 = sadd.s32 1, %s23
      %p29 = scmp.ge.s32.totalorder %s28, 2
      %s30 = scalar_select %p29, 0, %s28
      %s31 = sadd.s32 1, %s22
      %s32 = scalar_select %p29, %s31, %s22
      %p33 = scmp.ge.s32.totalorder %s32, 1
      %s34 = scalar_select %p33, 0, %s32
      %s35 = ssub.s32 %s23, %s30
      %p36 = scmp.eq.s32.totalorder %s35, 0
      %s38 = sadd.s32 %s37, 1
      %s39 = scalar_select %p36, %s37, %s38
      %p42 = pneg %p36
      %p43 = scmp.eq.s32.totalorder %s15, 1
      %p44 = por %p42, %p43
      %p45 = scmp.ne.s32.totalorder %s37, %s40
      %p46 = scmp.eq.s32.totalorder %s15, 0
      %p47 = por %p45, %p46
      %p48 = scmp.ne.s32.totalorder %s37, %s40
      %p49 = scmp.eq.s32.totalorder %s20, 1
      %p50 = por %p48, %p49
      %p51 = scmp.ne.s32.totalorder %s40, %s41
      %p52 = scmp.eq.s32.totalorder %s20, 0
      %p53 = por %p51, %p52
      %p54 = scmp.ne.s32.totalorder %s40, %s41
      %p55 = scmp.eq.s32.totalorder %s21, 1
      %p56 = por %p54, %p55
      %p58 = scmp.ne.s32.totalorder %s41, %s57
      %p59 = scmp.eq.s32.totalorder %s21, 0
      %p60 = por %p58, %p59
      %s61 = ssub.s32 %s22, %s34
      %p62 = scmp.eq.s32.totalorder %s61, 0
      %s64 = sadd.s32 %s63, 1
      %s65 = scalar_select %p62, %s63, %s64
      %p68 = pneg %p62
      %p69 = scmp.eq.s32.totalorder %s15, 1
      %p70 = por %p68, %p69
      %p71 = scmp.ne.s32.totalorder %s63, %s66
      %p72 = scmp.eq.s32.totalorder %s15, 0
      %p73 = por %p71, %p72
      %p74 = scmp.ne.s32.totalorder %s63, %s66
      %p75 = scmp.eq.s32.totalorder %s20, 1
      %p76 = por %p74, %p75
      %p77 = scmp.ne.s32.totalorder %s66, %s67
      %p78 = scmp.eq.s32.totalorder %s20, 0
      %p79 = por %p77, %p78
      %p80 = scmp.ne.s32.totalorder %s66, %s67
      %p81 = scmp.eq.s32.totalorder %s21, 1
      %p82 = por %p80, %p81
      %p84 = scmp.ne.s32.totalorder %s67, %s83
      %p85 = scmp.eq.s32.totalorder %s21, 0
      %p86 = por %p84, %p85
      %s87 = ssub.s32 %s22, %s34
      %p88 = scmp.eq.s32.totalorder %s87, 0
      %s90 = sadd.s32 %s89, 1
      %s91 = scalar_select %p88, %s89, %s90
      %p94 = pneg %p88
      %p95 = scmp.eq.s32.totalorder %s15, 1
      %p96 = por %p94, %p95
      %p97 = scmp.ne.s32.totalorder %s89, %s92
      %p98 = scmp.eq.s32.totalorder %s15, 0
      %p99 = por %p97, %p98
      %p100 = scmp.ne.s32.totalorder %s89, %s92
      %p101 = scmp.eq.s32.totalorder %s20, 1
      %p102 = por %p100, %p101
      %p103 = scmp.ne.s32.totalorder %s92, %s93
      %p104 = scmp.eq.s32.totalorder %s20, 0
      %p105 = por %p103, %p104
      %p106 = scmp.ne.s32.totalorder %s92, %s93
      %p107 = scmp.eq.s32.totalorder %s21, 1
      %p108 = por %p106, %p107
      %p110 = scmp.ne.s32.totalorder %s93, %s109
      %p111 = scmp.eq.s32.totalorder %s21, 0
      %p112 = por %p110, %p111
      %s113 = ssub.s32 %s22, %s34
      %s114 = ssub.s32 %s23, %s30
      %s115 = sor.u32 %s113, %s114
      %p116 = scmp.eq.s32.totalorder %s115, 0
      %s118 = sadd.s32 %s117, 1
      %s119 = scalar_select %p116, %s117, %s118
      %p122 = pneg %p116
      %p123 = scmp.eq.s32.totalorder %s15, 1
      %p124 = por %p122, %p123
      %p125 = scmp.ne.s32.totalorder %s117, %s120
      %p126 = scmp.eq.s32.totalorder %s15, 0
      %p127 = por %p125, %p126
      %p128 = scmp.ne.s32.totalorder %s117, %s120
      %p129 = scmp.eq.s32.totalorder %s20, 1
      %p130 = por %p128, %p129
      %p131 = scmp.ne.s32.totalorder %s120, %s121
      %p132 = scmp.eq.s32.totalorder %s20, 0
      %p133 = por %p131, %p132
      %p134 = scmp.ne.s32.totalorder %s120, %s121
      %p135 = scmp.eq.s32.totalorder %s21, 1
      %p136 = por %p134, %p135
      %p138 = scmp.ne.s32.totalorder %s121, %s137
      %p139 = scmp.eq.s32.totalorder %s21, 0
      %p140 = por %p138, %p139
      %p141 = scmp.le.s32.totalorder 1, %s15
      %p142 = scmp.lt.s32.totalorder %s15, 3
      %p143 = pnand %p141, %p142
      %p144 = pneg %p143
      // Predicated region
      $region9: #{tpu_custom_call.1} parent=5 // pred_check
        _
      $region10: #{tpu_custom_call.1} parent=5 // pred_check_branch
        %146 = sbr.rel (%p143) target = $region12
      $region11: #{tpu_custom_call.1} parent=5 // pred_region
        %s147 = ssub.s32 %s15, 1
        // Predicated region
        $region13: #{tpu_custom_call.1} parent=11 // pred_check
          %p148 = pneg %p79
        $region14: #{tpu_custom_call.1} parent=11 // pred_check_branch
          %150 = sbr.rel (%p148) target = $region16
        $region15: #{tpu_custom_call.1} parent=11 // pred_region
          %p151 = scmp.lt.s32.totalorder %s24, 0
          %s152 = scalar_select %p151, %s24, 0
          %s153 = smul.addr %s152, 4
          %s154 = scalar_lea.vmem %s1, %s153
        $region16: #{tpu_custom_call.1} parent=11 // pred_fallthru
          _
        // Predicated region
        $region17: #{tpu_custom_call.1} parent=11 // pred_check
          %p155 = pneg %p105
        $region18: #{tpu_custom_call.1} parent=11 // pred_check_branch
          %157 = sbr.rel (%p155) target = $region20
        $region19: #{tpu_custom_call.1} parent=11 // pred_region
          %p158 = scmp.lt.s32.totalorder %s24, 0
          %s159 = scalar_select %p158, %s24, 0
          %s160 = smul.addr %s159, 8
          %s161 = scalar_lea.vmem %s2, %s160
        $region20: #{tpu_custom_call.1} parent=11 // pred_fallthru
          _
      $region12: #{tpu_custom_call.1} parent=5 // pred_fallthru
        _
      %p162 = scmp.lt.s32.totalorder %s15, 2
      // Predicated region
      $region21: #{tpu_custom_call.1} parent=5 // pred_check
        %p163 = pneg %p162
      $region22: #{tpu_custom_call.1} parent=5 // pred_check_branch
        %165 = sbr.rel (%p163) target = $region24
      $region23: #{tpu_custom_call.1} parent=5 // pred_region
        // Predicated region
        $region25: #{tpu_custom_call.1} parent=23 // pred_check
          %p166 = pneg %p47
        $region26: #{tpu_custom_call.1} parent=23 // pred_check_branch
          %168 = sbr.rel (%p166) target = $region28
        $region27: #{tpu_custom_call.1} parent=23 // pred_region
          %s169 = sand.u32 %s37, 1
          %s170 = scalar_lea.sflag [#allocation3], %s169
          %s171 = sand.u32 %s37, 1
          %s172 = smul.addr %s171, 96
          %s173 = scalar_lea.vmem [#allocation2], %s172
          %s174 = smul.u32 3, %s23
          %176 = vsyncadd %s170, 0
          %s177 = smul.addr %s174, 4
          %s178 = scalar_lea.hbm %s0, %s177
          %s179 = sshll.u32 %s178, 4
          %s180 = int_to_ptr.hbm [resolvable:$true] %s179
          %s181 = sshll.u32 %s173, 4
          %s182 = int_to_ptr.vmem [resolvable:$true] %s181
          %187 = dma.hbm_to_vmem [thread:$0]  %s180, 1536, %s182, %s170, 384, 192, 12
        $region28: #{tpu_custom_call.1} parent=23 // pred_fallthru
          _
      $region24: #{tpu_custom_call.1} parent=5 // pred_fallthru
        _
      %p188 = scmp.le.s32.totalorder 1, %s15
      %p189 = scmp.lt.s32.totalorder %s15, 3
      %p190 = pnand %p188, %p189
      %p191 = pneg %p190
      // Predicated region
      $region29: #{tpu_custom_call.1} parent=5 // pred_check
        _
      $region30: #{tpu_custom_call.1} parent=5 // pred_check_branch
        %193 = sbr.rel (%p190) target = $region32
      $region31: #{tpu_custom_call.1} parent=5 // pred_region
        %s194 = ssub.s32 %s15, 1
        %s195 = sand.u32 %s40, 1
        %s196 = scalar_lea.sflag [#allocation3], %s195
        %s197 = sand.u32 %s40, 1
        %s198 = smul.addr %s197, 96
        %s199 = scalar_lea.vmem [#allocation2], %s198
        // Predicated region
        $region33: #{tpu_custom_call.1} parent=31 // pred_check
          %p200 = pneg %p53
        $region34: #{tpu_custom_call.1} parent=31 // pred_check_branch
          %202 = sbr.rel (%p200) target = $region36
        $region35: #{tpu_custom_call.1} parent=31 // pred_region
          %204 = dma.done %s196, 1536
        $region36: #{tpu_custom_call.1} parent=31 // pred_fallthru
          _
        %s205 = sand.u32 %s40, 1
        %s206 = scalar_lea.sflag [#allocation3], %s205
        %s207 = sand.u32 %s40, 1
        %s208 = smul.addr %s207, 96
        %s209 = scalar_lea.vmem [#allocation2], %s208
        %p210 = pneg %p53
        %p211 = pneg %p50
        %p212 = scmp.lt.s32.totalorder %s24, 0
        %s213 = scalar_select %p212, %s24, 0
        %s214 = smul.addr %s213, 4
        %s215 = scalar_lea.vmem %s1, %s214
        %p216 = pneg %p79
        %p217 = pneg %p76
        %p218 = scmp.lt.s32.totalorder %s24, 0
        %s219 = scalar_select %p218, %s24, 0
        %s220 = smul.addr %s219, 8
        %s221 = scalar_lea.vmem %s2, %s220
        %p222 = pneg %p105
        %p223 = pneg %p102
        %p224 = pneg %p133
        %p225 = pneg %p130
        %s226 = sand.u32 %s120, 1
        %s227 = scalar_lea.sflag [#allocation4], %s226
        %s228 = sand.u32 %s120, 1
        %s229 = smul.addr %s228, 24
        %s230 = scalar_lea.vmem [#allocation5], %s229
        %s231 = smul.u32 3, %s25
        %p232 = scmp.lt.s32.totalorder %s24, 0
        %s233 = scalar_select %p232, %s24, 0
        %s234 = smul.addr %s233, 4
        %s235 = scalar_lea.vmem %s1, %s234
        %p236 = scmp.lt.s32.totalorder %s24, 0
        %s237 = scalar_select %p236, %s24, 0
        %s238 = smul.addr %s237, 8
        %s239 = scalar_lea.vmem %s2, %s238
        %s240 = smul.u32 3, %s25
        %v242 = vld [vmem:[%s235] sm:$0xf]
        %v243 = vld [vmem:[%s199] sm:$0xff]
        %v244 = vld [vmem:[%s199 + $0x8] sm:$0xf]
        %v245 = vld [vmem:[%s199 + $0xc] sm:$0xff]
        %v246 = vld [vmem:[%s199 + $0x14] sm:$0xf]
        %v247 = vld [vmem:[%s199 + $0x18] sm:$0xff]
        %v248 = vld [vmem:[%s199 + $0x20] sm:$0xf]
        %v249 = vld [vmem:[%s199 + $0x24] sm:$0xff]
        %v250 = vld [vmem:[%s199 + $0x2c] sm:$0xf]
        %v251 = vld [vmem:[%s199 + $0x30] sm:$0xff]
        %v252 = vld [vmem:[%s199 + $0x38] sm:$0xf]
        %v253 = vld [vmem:[%s199 + $0x3c] sm:$0xff]
        %v254 = vld [vmem:[%s199 + $0x44] sm:$0xf]
        %v255 = vld [vmem:[%s199 + $0x48] sm:$0xff]
        %v256 = vld [vmem:[%s199 + $0x50] sm:$0xf]
        %v257 = vld [vmem:[%s199 + $0x54] sm:$0xff]
        %v258 = vld [vmem:[%s199 + $0x5c] sm:$0xf]
        %v259 = vld [vmem:[%s239] sm:$0xff]
        %261 = vset.pattern.permute.xlu0 0
        %262 = vperm.xlu0 %261, %v259
        %v263 = vpop.permute.xlu0 %262
        %v281 = vunpack.c.l.b16 %v243
        %v282 = vunpack.c.h.b16 %v243
        %v283 = vunpack.c.l.b16 %v244
        %v284 = vunpack.c.l.b16 %v245
        %v285 = vunpack.c.h.b16 %v245
        %v286 = vunpack.c.l.b16 %v246
        %v287 = vunpack.c.l.b16 %v247
        %v288 = vunpack.c.h.b16 %v247
        %v289 = vunpack.c.l.b16 %v248
        %v290 = vunpack.c.l.b16 %v249
        %v291 = vunpack.c.h.b16 %v249
        %v292 = vunpack.c.l.b16 %v250
        %v293 = vunpack.c.l.b16 %v251
        %v294 = vunpack.c.h.b16 %v251
        %v295 = vunpack.c.l.b16 %v252
        %v296 = vunpack.c.l.b16 %v253
        %v297 = vunpack.c.h.b16 %v253
        %v298 = vunpack.c.l.b16 %v254
        %v299 = vunpack.c.l.b16 %v255
        %v300 = vunpack.c.h.b16 %v255
        %v301 = vunpack.c.l.b16 %v256
        %v302 = vunpack.c.l.b16 %v257
        %v303 = vunpack.c.h.b16 %v257
        %v304 = vunpack.c.l.b16 %v258
        %v305 = vpack.c.b16 %v284, %v281
        %v306 = vpack.c.b16 %v285, %v282
        %v307 = vpack.c.b16 %v286, %v283
        %v308 = vpack.c.b16 %v290, %v287
        %v309 = vpack.c.b16 %v291, %v288
        %v310 = vpack.c.b16 %v292, %v289
        %v311 = vpack.c.b16 %v296, %v293
        %v312 = vpack.c.b16 %v297, %v294
        %v313 = vpack.c.b16 %v298, %v295
        %v314 = vpack.c.b16 %v302, %v299
        %v315 = vpack.c.b16 %v303, %v300
        %v316 = vpack.c.b16 %v304, %v301
        %vm329 = vcmask 523264
        %v331 = vsel %vm329, %v242, 0
        %333 = vmatpush.bf16.msra.mxu0 0
        %334 = vmatpush.bf16.msra.mxu0 0
        %335 = vmatpush.bf16.msra.mxu0 0
        %336 = vmatpush.bf16.msra.mxu0 0
        %337 = vmatpush.bf16.msra.mxu0 %v314
        %338 = vmatpush.bf16.msra.mxu0 %v311
        %339 = vmatpush.bf16.msra.mxu0 %v308
        %340 = vmatpush.bf16.msra.mxu0 %v305
        %341 = vmatmul.bf16.gmra.mxu0 %v331
        %v342 = vpop.f32.mrf.mxu0
        %v343 = vadd.f32 %v263, %v342
        %v344 = vpop.f32.mrf.mxu0
        %345 = vdwg.mxu0
        %346 = vmatpush.bf16.msra.mxu0 0
        %347 = vmatpush.bf16.msra.mxu0 0
        %348 = vmatpush.bf16.msra.mxu0 0
        %349 = vmatpush.bf16.msra.mxu0 0
        %350 = vmatpush.bf16.msra.mxu0 %v315
        %351 = vmatpush.bf16.msra.mxu0 %v312
        %352 = vmatpush.bf16.msra.mxu0 %v309
        %353 = vmatpush.bf16.msra.mxu0 %v306
        %354 = vmatmul.bf16.gmra.mxu0 %v331
        %v355 = vpop.f32.mrf.mxu0
        %v356 = vadd.f32 %v263, %v355
        %v357 = vpop.f32.mrf.mxu0
        %358 = vdwg.mxu0
        %359 = vmatpush.bf16.msra.mxu0 0
        %360 = vmatpush.bf16.msra.mxu0 0
        %361 = vmatpush.bf16.msra.mxu0 0
        %362 = vmatpush.bf16.msra.mxu0 0
        %363 = vmatpush.bf16.msra.mxu0 %v316
        %364 = vmatpush.bf16.msra.mxu0 %v313
        %365 = vmatpush.bf16.msra.mxu0 %v310
        %366 = vmatpush.bf16.msra.mxu0 %v307
        %367 = vmatmul.bf16.gmra.mxu0 %v331
        %v368 = vpop.f32.mrf.mxu0
        %v369 = vadd.f32 %v263, %v368
        %v370 = vpop.f32.mrf.mxu0
        %371 = vdwg.mxu0
        %372 = vst [vmem:[%s230] sm:$0xff] %v343
        %373 = vst [vmem:[%s230 + $0x8] sm:$0xff] %v356
        %374 = vst [vmem:[%s230 + $0x10] sm:$0xff] %v369
        %s375 = sand.u32 %s120, 1
        %s376 = scalar_lea.sflag [#allocation4], %s375
        %s377 = sand.u32 %s120, 1
        %s378 = smul.addr %s377, 24
        %s379 = scalar_lea.vmem [#allocation5], %s378
        // Predicated region
        $region37: #{tpu_custom_call.1} parent=31 // pred_check
          %p380 = pneg %p130
        $region38: #{tpu_custom_call.1} parent=31 // pred_check_branch
          %382 = sbr.rel (%p380) target = $region40
        $region39: #{tpu_custom_call.1} parent=31 // pred_region
          %s383 = smul.u32 3, %s25
          %385 = vsyncadd %s376, 0
          %s386 = smul.addr %s24, 6
          %s387 = sadd.s32 %s383, %s386
          %s388 = smul.addr %s387, 8
          %s389 = scalar_lea.hbm %s3, %s388
          %s391 = sshll.u32 %s379, 4
          %s392 = int_to_ptr.vmem [resolvable:$true] %s391
          %s393 = sshll.u32 %s389, 4
          %s394 = int_to_ptr.hbm [resolvable:$true] %s393
          %396 = dma.vmem_to_hbm [thread:$0]  %s392, 384, %s394, %s376
        $region40: #{tpu_custom_call.1} parent=31 // pred_fallthru
          _
      $region32: #{tpu_custom_call.1} parent=5 // pred_fallthru
        _
      %p397 = scmp.le.s32.totalorder 2, %s15
      // Predicated region
      $region41: #{tpu_custom_call.1} parent=5 // pred_check
        %p398 = pneg %p397
      $region42: #{tpu_custom_call.1} parent=5 // pred_check_branch
        %400 = sbr.rel (%p398) target = $region44
      $region43: #{tpu_custom_call.1} parent=5 // pred_region
        %s401 = ssub.s32 %s15, 2
        // Predicated region
        $region45: #{tpu_custom_call.1} parent=43 // pred_check
          %p402 = pneg %p136
        $region46: #{tpu_custom_call.1} parent=43 // pred_check_branch
          %404 = sbr.rel (%p402) target = $region48
        $region47: #{tpu_custom_call.1} parent=43 // pred_region
          %s405 = sand.u32 %s121, 1
          %s406 = scalar_lea.sflag [#allocation4], %s405
          %s407 = sand.u32 %s121, 1
          %s408 = smul.addr %s407, 24
          %s409 = scalar_lea.vmem [#allocation5], %s408
          %411 = dma.done %s406, 384
        $region48: #{tpu_custom_call.1} parent=43 // pred_fallthru
          _
      $region44: #{tpu_custom_call.1} parent=5 // pred_fallthru
        _
    $region6: #{tpu_custom_call.1} parent=1 // loop_footer
      %s19 = sadd.s32 1, %s15
    $region7: #{tpu_custom_call.1} parent=1 // loop_footer_branch
      %14 = sbr.rel target = $region3
    $region8: #{tpu_custom_call.1} parent=1 // loop_exit
      _
    %412 = vsyncpa [#allocation3], 1
    %s413 = scalar_lea.sflag [#allocation3], 1
    %414 = vsyncpa %s413, 1
    %415 = vsyncpa [#allocation4], 1
    %s416 = scalar_lea.sflag [#allocation4], 1
    %417 = vsyncpa %s416, 1

</llo_original>
